<compile_context>
chip_gen: v7x
topology: tpu7x:2x2x1
jax: 0.10.0
libtpu: 0.0.40
codegen_flags: <defaults>
</compile_context>

<pallas_src>
import functools

import jax
import jax.numpy as jnp
import numpy as np
from jax.experimental import pallas as pl
from jax.experimental.pallas import tpu as pltpu


# ------------------------- Pallas kernel -------------------------

def _reorg_kernel(x_ref, sel_ref, o_ref, *, stride, width):
    """x_ref:   (1, A_t, K)        K = s*s*W, columns ordered (s1, ww, s2)
       sel_ref: (s, s*W, W)        sel_ref[s2][ww*s + s2, ww] = 1  (phase selector)
       o_ref:   (1, s*s, A_t, W)   plane p = s1*s + s2, columns ordered ww."""
    s, W = stride, width
    sW = s * W
    for s1 in range(s):                                       # static unroll (2 for s=2)
        chunk = x_ref[0, :, s1 * sW:(s1 + 1) * sW]            # (A_t, s*W), columns (ww, s2)
        if chunk.dtype != sel_ref.dtype:
            chunk = chunk.astype(sel_ref.dtype)
        for s2 in range(s):
            # One-hot column gather on the otherwise-idle MXU; result written straight to
            # its output plane (no materialized full-row intermediate, no sliced stores).
            plane = jnp.dot(chunk, sel_ref[s2], preferred_element_type=jnp.float32)
            o_ref[0, s1 * s + s2, :, :] = plane.astype(o_ref.dtype)


# ------------------------- helpers -------------------------

def _build_phase_selectors(stride, width):
    """sel[s2, ww*s + s2, ww] = 1 : gathers phase s2 out of a (ww, s2)-interleaved chunk."""
    s, W = stride, width
    sel = np.zeros((s, s * W, W), dtype=np.float32)
    ww = np.arange(W)
    for s2 in range(s):
        sel[s2, ww * s + s2, ww] = 1.0
    return sel


def _pad(n, m):
    return ((n + m - 1) // m) * m


def _pick_a_tile(A, itemsize, sel_itemsize, stride, width,
                 vmem_budget_bytes=16 * 1024 * 1024):
    """Largest A-tile (full A, or a multiple-of-8 divisor of A) whose VMEM footprint
    (double-buffered in/out blocks + resident selectors + f32 temporaries, with (8,128)
    tile padding) stays under the budget."""
    s, W = stride, width
    K = s * s * W
    in_row = _pad(K, 128) * itemsize                       # input block, per A-row
    out_row = s * s * _pad(W, 128) * itemsize              # output block, per A-row
    tmp_row = _pad(s * W, 128) * 4 + _pad(W, 128) * 4      # live chunk + plane accumulator (f32)
    per_row = 2 * (in_row + out_row) + tmp_row             # 2x: double-buffered pipeline
    sel_bytes = 2 * s * _pad(s * W, 8) * _pad(W, 128) * sel_itemsize
    budget = max(per_row, vmem_budget_bytes - sel_bytes)
    max_rows = max(8, budget // per_row)
    if A <= max_rows:
        return A
    divisors = [d for d in range(8, A, 8) if A % d == 0]
    fits = [d for d in divisors if d <= max_rows]
    if fits:
        return fits[-1]
    return divisors[0] if divisors else A


def _maybe_split_for_cores(A, A_t, B):
    """v7x shards 'parallel' grid axes across 2 TensorCores: keep >= 2 grid blocks when we can."""
    if B * (A // A_t) >= 2:
        return A_t
    half = A_t // 2
    if half >= 8 and half % 8 == 0 and A % half == 0:
        return half
    return A_t


# ------------------------- wrapper -------------------------

@functools.partial(jax.jit, static_argnames=("stride",))
def reorg_forward(x, stride=2):
    """Equivalent of Reorg.forward with darknet=True (the only reachable branch)."""
    if x.ndim != 4:
        raise ValueError("input must have 4 dimensions")
    s = int(stride)
    B, C, H, W = x.shape
    if H % s != 0:
        raise ValueError(f"Dimension mismatch: {H} is not divisible by {s}")
    if W % s != 0:
        raise ValueError(f"Dimension mismatch: {W} is not divisible by {s}")
    if C % (s * s) != 0:
        raise ValueError(f"Dimension mismatch: {C} is not divisible by {s * s}")

    A = (C // (s * s)) * H            # (c2, hh) rows stay contiguous through the permutation
    K = s * s * W                     # (s1, ww, s2) columns per row
    itemsize = jnp.dtype(x.dtype).itemsize

    # Selector in the input dtype when that is MXU-friendly (bf16 stays single-pass; f32 stays
    # f32).  Other dtypes fall back to an f32 compute path (see TODO above).
    if x.dtype in (jnp.float32, jnp.bfloat16):
        compute_dtype = x.dtype
    else:
        compute_dtype = jnp.float32
    sel = jnp.asarray(_build_phase_selectors(s, W), dtype=compute_dtype)
    sel_itemsize = jnp.dtype(compute_dtype).itemsize

    # Metadata-only reshape of the contiguous NCHW buffer: rows = (c2, hh), cols = (s1, ww, s2).
    x2 = x.reshape(B, A, K)

    A_t = _pick_a_tile(A, itemsize, sel_itemsize, s, W)
    A_t = _maybe_split_for_cores(A, A_t, B)
    grid = (B, A // A_t)

    out4 = pl.pallas_call(
        functools.partial(_reorg_kernel, stride=s, width=W),
        out_shape=jax.ShapeDtypeStruct((B, s * s, A, W), x.dtype),
        grid_spec=pltpu.PrefetchScalarGridSpec(
            num_scalar_prefetch=0,
            grid=grid,
            in_specs=[
                pl.BlockSpec((1, A_t, K), lambda b, a: (b, a, 0)),
                # Constant-index block: fetched once and kept resident across the grid.
                pl.BlockSpec((s, s * W, W), lambda b, a: (0, 0, 0)),
            ],
            out_specs=pl.BlockSpec((1, s * s, A_t, W), lambda b, a: (b, 0, a, 0)),
        ),
        compiler_params=pltpu.CompilerParams(
            dimension_semantics=("parallel", "parallel"),
            vmem_limit_bytes=32 * 1024 * 1024),
        cost_estimate=pl.CostEstimate(
            flops=2 * B * A * K * (s * W),      # s*s planes x (A x W) outputs x (s*W) MACs
            transcendentals=0,
            bytes_accessed=2 * B * C * H * W * itemsize + int(sel.size) * sel_itemsize),
    )(x2, sel)

    # Metadata-only reshape: (B, s, s, C//s^2, H, W) flattened == (B, C*s^2, H//s, W//s).
    return out4.reshape(B, C * s * s, H // s, W // s)


# ------------------------- pure-JAX reference (mirrors the torch ops) -------------------------

def _reorg_reference(x, stride):
    B, C, H, W = x.shape
    s = stride
    x6 = x.reshape(B, C // (s * s), H, s, W, s)
    x6 = jnp.transpose(x6, (0, 3, 5, 1, 2, 4))
    return x6.reshape(B, C * s * s, H // s, W // s)


# ------------------------- main -------------------------

if __name__ == "__main__":
    stride = 2
    key = jax.random.PRNGKey(0)
    # bf16-representable f32 values: the one-hot MXU gather is then bit-exact regardless of the
    # backend's f32 matmul pass count, so we can assert exact equality against the reference.
    x = jax.random.normal(key, (2, 4, 16, 16), dtype=jnp.float32)   # B=2, C=4, H=W=16
    x = x.astype(jnp.bfloat16).astype(jnp.float32)

    out = jax.block_until_ready(reorg_forward(x, stride=stride))
    ref = jax.block_until_ready(_reorg_reference(x, stride))

    assert out.shape == (2, 4 * stride * stride, 16 // stride, 16 // stride), out.shape
    np.testing.assert_array_equal(np.asarray(out), np.asarray(ref))
    print("KERNEL_OK")
</pallas_src>

<mosaic_0001>
module attributes {stable_mosaic.version = 11 : i64} {
  func.func @_reorg_kernel(%arg0: i32, %arg1: i32, %arg2: memref<1x16x64xf32, #tpu.memory_space<vmem>>, %arg3: memref<2x32x16xf32, #tpu.memory_space<vmem>>, %arg4: memref<1x4x16x16xf32, #tpu.memory_space<vmem>>) attributes {dimension_semantics = [#tpu.dimension_semantics<parallel>, #tpu.dimension_semantics<parallel>], iteration_bounds = array<i64: 2, 1>, scalar_prefetch = 0 : i64, scratch_operands = 0 : i64, tpu.core_type = #tpu.core_type<tc>, window_params = [{transform_indices = @transform_0, window_bounds = array<i64: 1, 16, 64>}, {pipeline_mode = #tpu.pipeline_mode<synchronous>, transform_indices = @transform_1, window_bounds = array<i64: 2, 32, 16>}, {transform_indices = @transform_2, window_bounds = array<i64: 1, 4, 16, 16>}]} {
    %c0 = arith.constant 0 : index
    %c0_0 = arith.constant 0 : index
    %c0_1 = arith.constant 0 : index
    %0 = vector.load %arg2[%c0, %c0_0, %c0_1] : memref<1x16x64xf32, #tpu.memory_space<vmem>>, vector<1x16x32xf32>
    %1 = vector.shape_cast %0 : vector<1x16x32xf32> to vector<16x32xf32>
    %c0_2 = arith.constant 0 : index
    %c0_3 = arith.constant 0 : index
    %c0_4 = arith.constant 0 : index
    %2 = vector.load %arg3[%c0_2, %c0_3, %c0_4] : memref<2x32x16xf32, #tpu.memory_space<vmem>>, vector<1x32x16xf32>
    %3 = vector.shape_cast %2 : vector<1x32x16xf32> to vector<32x16xf32>
    %cst = arith.constant dense<0.000000e+00> : vector<16x16xf32>
    %4 = tpu.matmul %1, %3, %cst {dimension_numbers = #tpu.dot_dimension_numbers<[1], [0], [0], [1], [0, 0, 1, 1], [], []>} : vector<16x32xf32>, vector<32x16xf32>, vector<16x16xf32> -> vector<16x16xf32>
    %c0_5 = arith.constant 0 : index
    %c0_6 = arith.constant 0 : index
    %c0_7 = arith.constant 0 : index
    %c0_8 = arith.constant 0 : index
    %5 = vector.load %arg4[%c0_5, %c0_6, %c0_7, %c0_8] : memref<1x4x16x16xf32, #tpu.memory_space<vmem>>, vector<1x1x16x16xf32>
    %6 = vector.shape_cast %5 : vector<1x1x16x16xf32> to vector<16x16xf32>
    %7 = vector.shape_cast %4 : vector<16x16xf32> to vector<1x1x16x16xf32>
    tpu.vector_store %arg4[%c0_5, %c0_6, %c0_7, %c0_8], %7 {strides = array<i32>} : memref<1x4x16x16xf32, #tpu.memory_space<vmem>>, vector<1x1x16x16xf32>,
    %c1 = arith.constant 1 : index
    %c0_9 = arith.constant 0 : index
    %c0_10 = arith.constant 0 : index
    %8 = vector.load %arg3[%c1, %c0_9, %c0_10] : memref<2x32x16xf32, #tpu.memory_space<vmem>>, vector<1x32x16xf32>
    %9 = vector.shape_cast %8 : vector<1x32x16xf32> to vector<32x16xf32>
    %cst_11 = arith.constant dense<0.000000e+00> : vector<16x16xf32>
    %10 = tpu.matmul %1, %9, %cst_11 {dimension_numbers = #tpu.dot_dimension_numbers<[1], [0], [0], [1], [0, 0, 1, 1], [], []>} : vector<16x32xf32>, vector<32x16xf32>, vector<16x16xf32> -> vector<16x16xf32>
    %c0_12 = arith.constant 0 : index
    %c1_13 = arith.constant 1 : index
    %c0_14 = arith.constant 0 : index
    %c0_15 = arith.constant 0 : index
    %11 = vector.load %arg4[%c0_12, %c1_13, %c0_14, %c0_15] : memref<1x4x16x16xf32, #tpu.memory_space<vmem>>, vector<1x1x16x16xf32>
    %12 = vector.shape_cast %11 : vector<1x1x16x16xf32> to vector<16x16xf32>
    %13 = vector.shape_cast %10 : vector<16x16xf32> to vector<1x1x16x16xf32>
    tpu.vector_store %arg4[%c0_12, %c1_13, %c0_14, %c0_15], %13 {strides = array<i32>} : memref<1x4x16x16xf32, #tpu.memory_space<vmem>>, vector<1x1x16x16xf32>,
    %c0_16 = arith.constant 0 : index
    %c0_17 = arith.constant 0 : index
    %c32 = arith.constant 32 : index
    %14 = vector.load %arg2[%c0_16, %c0_17, %c32] : memref<1x16x64xf32, #tpu.memory_space<vmem>>, vector<1x16x32xf32>
    %15 = vector.shape_cast %14 : vector<1x16x32xf32> to vector<16x32xf32>
    %c0_18 = arith.constant 0 : index
    %c0_19 = arith.constant 0 : index
    %c0_20 = arith.constant 0 : index
    %16 = vector.load %arg3[%c0_18, %c0_19, %c0_20] : memref<2x32x16xf32, #tpu.memory_space<vmem>>, vector<1x32x16xf32>
    %17 = vector.shape_cast %16 : vector<1x32x16xf32> to vector<32x16xf32>
    %cst_21 = arith.constant dense<0.000000e+00> : vector<16x16xf32>
    %18 = tpu.matmul %15, %17, %cst_21 {dimension_numbers = #tpu.dot_dimension_numbers<[1], [0], [0], [1], [0, 0, 1, 1], [], []>} : vector<16x32xf32>, vector<32x16xf32>, vector<16x16xf32> -> vector<16x16xf32>
    %c0_22 = arith.constant 0 : index
    %c2 = arith.constant 2 : index
    %c0_23 = arith.constant 0 : index
    %c0_24 = arith.constant 0 : index
    %19 = vector.load %arg4[%c0_22, %c2, %c0_23, %c0_24] : memref<1x4x16x16xf32, #tpu.memory_space<vmem>>, vector<1x1x16x16xf32>
    %20 = vector.shape_cast %19 : vector<1x1x16x16xf32> to vector<16x16xf32>
    %21 = vector.shape_cast %18 : vector<16x16xf32> to vector<1x1x16x16xf32>
    tpu.vector_store %arg4[%c0_22, %c2, %c0_23, %c0_24], %21 {strides = array<i32>} : memref<1x4x16x16xf32, #tpu.memory_space<vmem>>, vector<1x1x16x16xf32>,
    %c1_25 = arith.constant 1 : index
    %c0_26 = arith.constant 0 : index
    %c0_27 = arith.constant 0 : index
    %22 = vector.load %arg3[%c1_25, %c0_26, %c0_27] : memref<2x32x16xf32, #tpu.memory_space<vmem>>, vector<1x32x16xf32>
    %23 = vector.shape_cast %22 : vector<1x32x16xf32> to vector<32x16xf32>
    %cst_28 = arith.constant dense<0.000000e+00> : vector<16x16xf32>
    %24 = tpu.matmul %15, %23, %cst_28 {dimension_numbers = #tpu.dot_dimension_numbers<[1], [0], [0], [1], [0, 0, 1, 1], [], []>} : vector<16x32xf32>, vector<32x16xf32>, vector<16x16xf32> -> vector<16x16xf32>
    %c0_29 = arith.constant 0 : index
    %c3 = arith.constant 3 : index
    %c0_30 = arith.constant 0 : index
    %c0_31 = arith.constant 0 : index
    %25 = vector.load %arg4[%c0_29, %c3, %c0_30, %c0_31] : memref<1x4x16x16xf32, #tpu.memory_space<vmem>>, vector<1x1x16x16xf32>
    %26 = vector.shape_cast %25 : vector<1x1x16x16xf32> to vector<16x16xf32>
    %27 = vector.shape_cast %24 : vector<16x16xf32> to vector<1x1x16x16xf32>
    tpu.vector_store %arg4[%c0_29, %c3, %c0_30, %c0_31], %27 {strides = array<i32>} : memref<1x4x16x16xf32, #tpu.memory_space<vmem>>, vector<1x1x16x16xf32>,
    return
  }
  func.func @transform_0(%arg0: i32, %arg1: i32) -> (i32, i32, i32) {
    %c0_i32 = arith.constant 0 : i32
    %c0_i32_0 = arith.constant 0 : i32
    return %arg0, %arg1, %c0_i32 : i32, i32, i32
  }
  func.func @transform_1(%arg0: i32, %arg1: i32) -> (i32, i32, i32) {
    %c0_i32 = arith.constant 0 : i32
    %c0_i32_0 = arith.constant 0 : i32
    %c0_i32_1 = arith.constant 0 : i32
    %c0_i32_2 = arith.constant 0 : i32
    return %c0_i32, %c0_i32_0, %c0_i32_1 : i32, i32, i32
  }
  func.func @transform_2(%arg0: i32, %arg1: i32) -> (i32, i32, i32, i32) {
    %c0_i32 = arith.constant 0 : i32
    %c0_i32_0 = arith.constant 0 : i32
    %c0_i32_1 = arith.constant 0 : i32
    return %arg0, %c0_i32, %arg1, %c0_i32_0 : i32, i32, i32, i32
  }
}

</mosaic_0001>

<llo_original>
// kernel: reorg_forward.1
$region0: #{reorg_forward.1}
  #allocation0 [shape = 'u32[]', space=smem, size = 0x4, offset = 0x4, fixed_abs, tag = 'smem constant byte address 0x4 - core index']
  #allocation1 [shape = 'u32[144,128]{1,0:T(1,128)}', space=vmem, size = 0x12000, scoped, tag = 'internal scratch']
  %s0 = inlined_call_operand.vmem [shape: f32[2,16,64], index: 0, kind: input, shape index: {}]
  %s1 = inlined_call_operand.vmem [shape: f32[2,32,16], index: 1, kind: input, shape index: {}]
  %s2 = inlined_call_operand.vmem [shape: f32[2,4,16,16], index: 2, kind: output, shape index: {}]
  %s3 = sld [smem:[#allocation0]]
  $region41: #{reorg_forward.1} parent=0
    _
  %s5 = ssub.s32 1, %s3
  %s6 = scalar_select 0, %s5, %s3
  loop: start=0, step=1, limit=4
  $region2: #{reorg_forward.1} parent=0 // loop_pre_header
    _
  $region3: #{reorg_forward.1} parent=0 // loop_header
    %s8 = sphi 0, %s12
    %p9 = scmp.ge.s32.totalorder %s8, 4
    %s15 = sphi 0, %s27
    %s16 = sphi 0, %s23
    %s17 = sphi 0, %s15
    %s18 = sphi 0, %s16
    %s19 = sphi 0, %s17
    %s20 = sphi 0, %s18
    %s32 = sphi 0, %s34
    %s35 = sphi 0, %s32
    %s36 = sphi 0, %s35
    %s52 = sphi 0, %s36
    %s56 = sphi 0, %s56
    %s58 = sphi 0, %s56
    %s59 = sphi 0, %s58
    %s73 = sphi 0, %s59
    %s81 = sphi 0, %s83
    %s84 = sphi 0, %s81
    %s85 = sphi 0, %s84
    %s101 = sphi 0, %s85
  $region4: #{reorg_forward.1} parent=0 // loop_header_branch
    %11 = sbr.rel (%p9) target = $region8
  $region5: #{reorg_forward.1} parent=0 // loop_body
    %s13 = ssub.s32 %s8, 1
    %s14 = ssub.s32 %s8, 2
    %s21 = sadd.s32 1, %s16
    %p22 = scmp.ge.s32.totalorder %s21, 1
    %s23 = scalar_select %p22, 0, %s21
    %s24 = sadd.s32 1, %s15
    %s25 = scalar_select %p22, %s24, %s15
    %p26 = scmp.ge.s32.totalorder %s25, 2
    %s27 = scalar_select %p26, 0, %s25
    %s28 = ssub.s32 %s15, %s27
    %s29 = ssub.s32 %s16, %s23
    %s30 = sor.u32 %s28, %s29
    %p31 = scmp.eq.s32.totalorder %s30, 0
    %s33 = sadd.s32 %s32, 1
    %s34 = scalar_select %p31, %s32, %s33
    %p37 = pneg %p31
    %p38 = scmp.eq.s32.totalorder %s8, 1
    %p39 = por %p37, %p38
    %p40 = scmp.ne.s32.totalorder %s32, %s35
    %p41 = scmp.eq.s32.totalorder %s8, 0
    %p42 = por %p40, %p41
    %p43 = scmp.ne.s32.totalorder %s32, %s35
    %p44 = scmp.eq.s32.totalorder %s13, 1
    %p45 = por %p43, %p44
    %p46 = scmp.ne.s32.totalorder %s35, %s36
    %p47 = scmp.eq.s32.totalorder %s13, 0
    %p48 = por %p46, %p47
    %p49 = scmp.ne.s32.totalorder %s35, %s36
    %p50 = scmp.eq.s32.totalorder %s14, 1
    %p51 = por %p49, %p50
    %p53 = scmp.ne.s32.totalorder %s36, %s52
    %p54 = scmp.eq.s32.totalorder %s14, 0
    %p55 = por %p53, %p54
    %s57 = sadd.s32 %s56, 1
    %p60 = scmp.eq.s32.totalorder %s8, 1
    %p61 = scmp.ne.s32.totalorder %s56, %s58
    %p62 = scmp.eq.s32.totalorder %s8, 0
    %p63 = por %p61, %p62
    %p64 = scmp.ne.s32.totalorder %s56, %s58
    %p65 = scmp.eq.s32.totalorder %s13, 1
    %p66 = por %p64, %p65
    %p67 = scmp.ne.s32.totalorder %s58, %s59
    %p68 = scmp.eq.s32.totalorder %s13, 0
    %p69 = por %p67, %p68
    %p70 = scmp.ne.s32.totalorder %s58, %s59
    %p71 = scmp.eq.s32.totalorder %s14, 1
    %p72 = por %p70, %p71
    %p74 = scmp.ne.s32.totalorder %s59, %s73
    %p75 = scmp.eq.s32.totalorder %s14, 0
    %p76 = por %p74, %p75
    %s77 = ssub.s32 %s15, %s27
    %s78 = ssub.s32 %s16, %s23
    %s79 = sor.u32 %s77, %s78
    %p80 = scmp.eq.s32.totalorder %s79, 0
    %s82 = sadd.s32 %s81, 1
    %s83 = scalar_select %p80, %s81, %s82
    %p86 = pneg %p80
    %p87 = scmp.eq.s32.totalorder %s8, 1
    %p88 = por %p86, %p87
    %p89 = scmp.ne.s32.totalorder %s81, %s84
    %p90 = scmp.eq.s32.totalorder %s8, 0
    %p91 = por %p89, %p90
    %p92 = scmp.ne.s32.totalorder %s81, %s84
    %p93 = scmp.eq.s32.totalorder %s13, 1
    %p94 = por %p92, %p93
    %p95 = scmp.ne.s32.totalorder %s84, %s85
    %p96 = scmp.eq.s32.totalorder %s13, 0
    %p97 = por %p95, %p96
    %p98 = scmp.ne.s32.totalorder %s84, %s85
    %p99 = scmp.eq.s32.totalorder %s14, 1
    %p100 = por %p98, %p99
    %p102 = scmp.ne.s32.totalorder %s85, %s101
    %p103 = scmp.eq.s32.totalorder %s14, 0
    %p104 = por %p102, %p103
    %p105 = scmp.le.s32.totalorder 1, %s8
    %p106 = scmp.lt.s32.totalorder %s8, 3
    %p107 = pnand %p105, %p106
    %p108 = pneg %p107
    // Predicated region
    $region9: #{reorg_forward.1} parent=5 // pred_check
      _
    $region10: #{reorg_forward.1} parent=5 // pred_check_branch
      %110 = sbr.rel (%p107) target = $region12
    $region11: #{reorg_forward.1} parent=5 // pred_region
      %s111 = ssub.s32 %s8, 1
      // Predicated region
      $region13: #{reorg_forward.1} parent=11 // pred_check
        %p112 = pneg %p69
      $region14: #{reorg_forward.1} parent=11 // pred_check_branch
        %114 = sbr.rel (%p112) target = $region16
      $region15: #{reorg_forward.1} parent=11 // pred_region
        _
      $region16: #{reorg_forward.1} parent=11 // pred_fallthru
        _
    $region12: #{reorg_forward.1} parent=5 // pred_fallthru
      _
    %p115 = scmp.lt.s32.totalorder %s8, 2
    // Predicated region
    $region17: #{reorg_forward.1} parent=5 // pred_check
      %p116 = pneg %p115
    $region18: #{reorg_forward.1} parent=5 // pred_check_branch
      %118 = sbr.rel (%p116) target = $region20
    $region19: #{reorg_forward.1} parent=5 // pred_region
      // Predicated region
      $region21: #{reorg_forward.1} parent=19 // pred_check
        %p119 = pneg %p42
      $region22: #{reorg_forward.1} parent=19 // pred_check_branch
        %121 = sbr.rel (%p119) target = $region24
      $region23: #{reorg_forward.1} parent=19 // pred_region
        %s122 = smul.u32 2, %s16
        %p123 = scmp.lt.s32.totalorder %s15, 1
        %s124 = scalar_select %p123, %s15, 1
        %p125 = scmp.lt.s32.totalorder %s122, 1
        %s126 = scalar_select %p125, %s122, 1
        %s127 = smul.addr %s124, 2
        %s128 = sadd.s32 %s126, %s127
        %s129 = smul.addr %s128, 8
        %s130 = scalar_lea.vmem %s0, %s129
        %s131 = smul.u32 2, %s16
      $region24: #{reorg_forward.1} parent=19 // pred_fallthru
        _
    $region20: #{reorg_forward.1} parent=5 // pred_fallthru
      _
    %p132 = scmp.le.s32.totalorder 1, %s8
    %p133 = scmp.lt.s32.totalorder %s8, 3
    %p134 = pnand %p132, %p133
    %p135 = pneg %p134
    // Predicated region
    $region25: #{reorg_forward.1} parent=5 // pred_check
      _
    $region26: #{reorg_forward.1} parent=5 // pred_check_branch
      %137 = sbr.rel (%p134) target = $region28
    $region27: #{reorg_forward.1} parent=5 // pred_region
      %s138 = ssub.s32 %s8, 1
      %s139 = smul.u32 2, %s18
      %p140 = scmp.lt.s32.totalorder %s17, 1
      %s141 = scalar_select %p140, %s17, 1
      %p142 = scmp.lt.s32.totalorder %s139, 1
      %s143 = scalar_select %p142, %s139, 1
      %s144 = smul.addr %s141, 2
      %s145 = sadd.s32 %s143, %s144
      %s146 = smul.addr %s145, 8
      %s147 = scalar_lea.vmem %s0, %s146
      %p148 = pneg %p48
      %p149 = pneg %p45
      %p150 = pneg %p69
      %p151 = pneg %p66
      %p152 = pneg %p97
      %p153 = pneg %p94
      %s154 = smul.u32 2, %s18
      %p155 = scmp.lt.s32.totalorder %s17, 1
      %s156 = scalar_select %p155, %s17, 1
      %p157 = scmp.lt.s32.totalorder %s154, 1
      %s158 = scalar_select %p157, %s154, 1
      %s159 = smul.addr %s156, 8
      %s160 = sadd.s32 %s158, %s159
      %s161 = smul.addr %s160, 8
      %s162 = scalar_lea.vmem %s2, %s161
      %s163 = smul.u32 2, %s18
      %p164 = scmp.lt.s32.totalorder %s17, 1
      %s165 = scalar_select %p164, %s17, 1
      %p166 = scmp.lt.s32.totalorder %s163, 1
      %s167 = scalar_select %p166, %s163, 1
      %s168 = smul.addr %s165, 2
      %s169 = sadd.s32 %s167, %s168
      %s170 = smul.addr %s169, 8
      %s171 = scalar_lea.vmem %s0, %s170
      %s172 = smul.u32 2, %s18
      %s173 = smul.u32 2, %s18
      %p174 = scmp.lt.s32.totalorder %s17, 1
      %s175 = scalar_select %p174, %s17, 1
      %p176 = scmp.lt.s32.totalorder %s173, 1
      %s177 = scalar_select %p176, %s173, 1
      %s178 = smul.addr %s175, 8
      %s179 = sadd.s32 %s177, %s178
      %s180 = smul.addr %s179, 8
      %s181 = scalar_lea.vmem %s2, %s180
      %s182 = smul.u32 2, %s18
      %v183 = vld [vmem:[%s171] sm:$0xff]
      %v184 = vld [vmem:[%s171 + $0x8] sm:$0xff]
      %v185 = vld [vmem:[%s1] sm:$0xff]
      %v186 = vld [vmem:[%s1 + $0x8] sm:$0xff]
      %v187 = vld [vmem:[%s1 + $0x10] sm:$0xff]
      %v188 = vld [vmem:[%s1 + $0x18] sm:$0xff]
      %vm189 = vcmask 261120
      %v191 = vsel %vm189, %v183, 0
      %v194 = vsel %vm189, %v184, 0
      %196 = vmatprep.subr.mxu0 0.0
      %197 = vmatpush1.msra.mxu0 %v185
      %198 = vmatprep.subr.mxu0 0.0
      %199 = vmatpush1.msra.mxu0 %v186
      %200 = vmatprep.subr.mxu0 0.0
      %201 = vmatpush1.msra.mxu0 %v187
      %202 = vmatprep.subr.mxu0 0.0
      %203 = vmatpush1.msra.mxu0 %v188
      %204 = vmatprep.subr.mxu0 0.0
      %205 = vmatpush1.msra.mxu0 0.0
      %206 = vmatprep.subr.mxu0 0.0
      %207 = vmatpush1.msra.mxu0 0.0
      %208 = vmatprep.subr.mxu0 0.0
      %209 = vmatpush1.msra.mxu0 0.0
      %210 = vmatprep.subr.mxu0 0.0
      %211 = vmatpush1.msra.mxu0 0.0
      %212 = vmatprep.subr.mxu0 0.0
      %213 = vmatpush1.msra.mxu0 0.0
      %214 = vmatprep.subr.mxu0 0.0
      %215 = vmatpush1.msra.mxu0 0.0
      %216 = vmatprep.subr.mxu0 0.0
      %217 = vmatpush1.msra.mxu0 0.0
      %218 = vmatprep.subr.mxu0 0.0
      %219 = vmatpush1.msra.mxu0 0.0
      %220 = vmatprep.subr.mxu0 0.0
      %221 = vmatpush1.msra.mxu0 0.0
      %222 = vmatprep.subr.mxu0 0.0
      %223 = vmatpush1.msra.mxu0 0.0
      %224 = vmatprep.subr.mxu0 0.0
      %225 = vmatpush1.msra.mxu0 0.0
      %226 = vmatprep.subr.mxu0 0.0
      %227 = vmatpush1.msra.mxu0 0.0
      %228 = vmatprep.subr.mxu0 0.0
      %229 = vmatpush1.msra.mxu0 0.0
      %230 = vmatprep.subr.mxu0 0.0
      %231 = vmatpush1.msra.mxu0 0.0
      %232 = vmatprep.subr.mxu0 0.0
      %233 = vmatpush1.msra.mxu0 0.0
      %234 = vmatprep.subr.mxu0 0.0
      %235 = vmatpush1.msra.mxu0 0.0
      %236 = vmatprep.subr.mxu0 0.0
      %237 = vmatpush1.msra.mxu0 0.0
      %238 = vmatprep.subr.mxu0 0.0
      %239 = vmatpush1.msra.mxu0 0.0
      %240 = vmatprep.subr.mxu0 0.0
      %241 = vmatpush1.msra.mxu0 0.0
      %242 = vmatprep.subr.mxu0 0.0
      %243 = vmatpush1.msra.mxu0 0.0
      %244 = vmatprep.subr.mxu0 0.0
      %245 = vmatpush1.msra.mxu0 0.0
      %246 = vmatprep.subr.mxu0 0.0
      %247 = vmatpush1.msra.mxu0 0.0
      %248 = vmatprep.subr.mxu0 0.0
      %249 = vmatpush1.msra.mxu0 0.0
      %250 = vmatprep.subr.mxu0 0.0
      %251 = vmatpush1.msra.mxu0 0.0
      %252 = vmatprep.subr.mxu0 0.0
      %253 = vmatpush1.msra.mxu0 0.0
      %254 = vmatprep.subr.mxu0 0.0
      %255 = vmatpush1.msra.mxu0 0.0
      %256 = vmatprep.subr.mxu0 0.0
      %257 = vmatpush1.msra.mxu0 0.0
      %258 = vmatprep.subr.mxu0 0.0
      %259 = vmatpush1.msra.mxu0 0.0
      %260 = vmatprep.mubr.f32.mxu0 0.0
      %261 = vmatmul.mubr.f32.gmra.mrb[0].mxu0 %v191
      %v262 = vpop.f32.mrb[0].mxu0
      %v263 = vadd.f32 0.0, %v262
      %v264 = vpop.f32.mrb[0].mxu0
      %265 = vmatprep.mubr.f32.mxu0 0.0
      %266 = vmatmul.mubr.f32.gmra.mrb[0].mxu0 %v194
      %v267 = vpop.f32.mrb[0].mxu0
      %v268 = vadd.f32 0.0, %v267
      %v269 = vpop.f32.mrb[0].mxu0
      %270 = vdwg.mxu0
      %vm271 = vcmask 130048
      %272 = vst.msk [vmem:[%s181] sm:$0xff] %vm271, %v263
      %273 = vst.msk [vmem:[%s181 + $0x8] sm:$0xff] %vm271, %v268
      %s274 = scalar_lea.vmem %s1, 32
      %v275 = vld [vmem:[%s274] sm:$0xff]
      %v276 = vld [vmem:[%s274 + $0x8] sm:$0xff]
      %v277 = vld [vmem:[%s274 + $0x10] sm:$0xff]
      %v278 = vld [vmem:[%s274 + $0x18] sm:$0xff]
      %279 = vmatprep.subr.mxu0 0.0
      %280 = vmatpush1.msra.mxu0 %v275
      %281 = vmatprep.subr.mxu0 0.0
      %282 = vmatpush1.msra.mxu0 %v276
      %283 = vmatprep.subr.mxu0 0.0
      %284 = vmatpush1.msra.mxu0 %v277
      %285 = vmatprep.subr.mxu0 0.0
      %286 = vmatpush1.msra.mxu0 %v278
      %287 = vmatprep.subr.mxu0 0.0
      %288 = vmatpush1.msra.mxu0 0.0
      %289 = vmatprep.subr.mxu0 0.0
      %290 = vmatpush1.msra.mxu0 0.0
      %291 = vmatprep.subr.mxu0 0.0
      %292 = vmatpush1.msra.mxu0 0.0
      %293 = vmatprep.subr.mxu0 0.0
      %294 = vmatpush1.msra.mxu0 0.0
      %295 = vmatprep.subr.mxu0 0.0
      %296 = vmatpush1.msra.mxu0 0.0
      %297 = vmatprep.subr.mxu0 0.0
      %298 = vmatpush1.msra.mxu0 0.0
      %299 = vmatprep.subr.mxu0 0.0
      %300 = vmatpush1.msra.mxu0 0.0
      %301 = vmatprep.subr.mxu0 0.0
      %302 = vmatpush1.msra.mxu0 0.0
      %303 = vmatprep.subr.mxu0 0.0
      %304 = vmatpush1.msra.mxu0 0.0
      %305 = vmatprep.subr.mxu0 0.0
      %306 = vmatpush1.msra.mxu0 0.0
      %307 = vmatprep.subr.mxu0 0.0
      %308 = vmatpush1.msra.mxu0 0.0
      %309 = vmatprep.subr.mxu0 0.0
      %310 = vmatpush1.msra.mxu0 0.0
      %311 = vmatprep.subr.mxu0 0.0
      %312 = vmatpush1.msra.mxu0 0.0
      %313 = vmatprep.subr.mxu0 0.0
      %314 = vmatpush1.msra.mxu0 0.0
      %315 = vmatprep.subr.mxu0 0.0
      %316 = vmatpush1.msra.mxu0 0.0
      %317 = vmatprep.subr.mxu0 0.0
      %318 = vmatpush1.msra.mxu0 0.0
      %319 = vmatprep.subr.mxu0 0.0
      %320 = vmatpush1.msra.mxu0 0.0
      %321 = vmatprep.subr.mxu0 0.0
      %322 = vmatpush1.msra.mxu0 0.0
      %323 = vmatprep.subr.mxu0 0.0
      %324 = vmatpush1.msra.mxu0 0.0
      %325 = vmatprep.subr.mxu0 0.0
      %326 = vmatpush1.msra.mxu0 0.0
      %327 = vmatprep.subr.mxu0 0.0
      %328 = vmatpush1.msra.mxu0 0.0
      %329 = vmatprep.subr.mxu0 0.0
      %330 = vmatpush1.msra.mxu0 0.0
      %331 = vmatprep.subr.mxu0 0.0
      %332 = vmatpush1.msra.mxu0 0.0
      %333 = vmatprep.subr.mxu0 0.0
      %334 = vmatpush1.msra.mxu0 0.0
      %335 = vmatprep.subr.mxu0 0.0
      %336 = vmatpush1.msra.mxu0 0.0
      %337 = vmatprep.subr.mxu0 0.0
      %338 = vmatpush1.msra.mxu0 0.0
      %339 = vmatprep.subr.mxu0 0.0
      %340 = vmatpush1.msra.mxu0 0.0
      %341 = vmatprep.subr.mxu0 0.0
      %342 = vmatpush1.msra.mxu0 0.0
      %343 = vmatprep.mubr.f32.mxu0 0.0
      %344 = vmatmul.mubr.f32.gmra.mrb[0].mxu0 %v191
      %v345 = vpop.f32.mrb[0].mxu0
      %v346 = vadd.f32 0.0, %v345
      %v347 = vpop.f32.mrb[0].mxu0
      %348 = vmatprep.mubr.f32.mxu0 0.0
      %349 = vmatmul.mubr.f32.gmra.mrb[0].mxu0 %v194
      %v350 = vpop.f32.mrb[0].mxu0
      %v351 = vadd.f32 0.0, %v350
      %v352 = vpop.f32.mrb[0].mxu0
      %353 = vdwg.mxu0
      %s354 = scalar_lea.vmem %s181, 16
      %355 = vst.msk [vmem:[%s354] sm:$0xff] %vm271, %v346
      %356 = vst.msk [vmem:[%s354 + $0x8] sm:$0xff] %vm271, %v351
      %v357 = vld [vmem:[%s171] sm:$0xff]
      %v358 = vld [vmem:[%s171 + $0x8] sm:$0xff]
      %v359 = vld [vmem:[%s1] sm:$0xff]
      %v360 = vld [vmem:[%s1 + $0x8] sm:$0xff]
      %v361 = vld [vmem:[%s1 + $0x10] sm:$0xff]
      %v362 = vld [vmem:[%s1 + $0x18] sm:$0xff]
      %365 = vrot.lane.b32.xlu0 %v357, 96
      %v366 = vpop.permute.xlu0 %365
      %367 = vrot.lane.b32.xlu0 %v358, 96
      %v368 = vpop.permute.xlu0 %367
      %v369 = vsel %vm189, %v366, 0
      %v371 = vsel %vm189, %v368, 0
      %373 = vmatprep.subr.mxu0 0.0
      %374 = vmatpush1.msra.mxu0 %v359
      %375 = vmatprep.subr.mxu0 0.0
      %376 = vmatpush1.msra.mxu0 %v360
      %377 = vmatprep.subr.mxu0 0.0
      %378 = vmatpush1.msra.mxu0 %v361
      %379 = vmatprep.subr.mxu0 0.0
      %380 = vmatpush1.msra.mxu0 %v362
      %381 = vmatprep.subr.mxu0 0.0
      %382 = vmatpush1.msra.mxu0 0.0
      %383 = vmatprep.subr.mxu0 0.0
      %384 = vmatpush1.msra.mxu0 0.0
      %385 = vmatprep.subr.mxu0 0.0
      %386 = vmatpush1.msra.mxu0 0.0
      %387 = vmatprep.subr.mxu0 0.0
      %388 = vmatpush1.msra.mxu0 0.0
      %389 = vmatprep.subr.mxu0 0.0
      %390 = vmatpush1.msra.mxu0 0.0
      %391 = vmatprep.subr.mxu0 0.0
      %392 = vmatpush1.msra.mxu0 0.0
      %393 = vmatprep.subr.mxu0 0.0
      %394 = vmatpush1.msra.mxu0 0.0
      %395 = vmatprep.subr.mxu0 0.0
      %396 = vmatpush1.msra.mxu0 0.0
      %397 = vmatprep.subr.mxu0 0.0
      %398 = vmatpush1.msra.mxu0 0.0
      %399 = vmatprep.subr.mxu0 0.0
      %400 = vmatpush1.msra.mxu0 0.0
      %401 = vmatprep.subr.mxu0 0.0
      %402 = vmatpush1.msra.mxu0 0.0
      %403 = vmatprep.subr.mxu0 0.0
      %404 = vmatpush1.msra.mxu0 0.0
      %405 = vmatprep.subr.mxu0 0.0
      %406 = vmatpush1.msra.mxu0 0.0
      %407 = vmatprep.subr.mxu0 0.0
      %408 = vmatpush1.msra.mxu0 0.0
      %409 = vmatprep.subr.mxu0 0.0
      %410 = vmatpush1.msra.mxu0 0.0
      %411 = vmatprep.subr.mxu0 0.0
      %412 = vmatpush1.msra.mxu0 0.0
      %413 = vmatprep.subr.mxu0 0.0
      %414 = vmatpush1.msra.mxu0 0.0
      %415 = vmatprep.subr.mxu0 0.0
      %416 = vmatpush1.msra.mxu0 0.0
      %417 = vmatprep.subr.mxu0 0.0
      %418 = vmatpush1.msra.mxu0 0.0
      %419 = vmatprep.subr.mxu0 0.0
      %420 = vmatpush1.msra.mxu0 0.0
      %421 = vmatprep.subr.mxu0 0.0
      %422 = vmatpush1.msra.mxu0 0.0
      %423 = vmatprep.subr.mxu0 0.0
      %424 = vmatpush1.msra.mxu0 0.0
      %425 = vmatprep.subr.mxu0 0.0
      %426 = vmatpush1.msra.mxu0 0.0
      %427 = vmatprep.subr.mxu0 0.0
      %428 = vmatpush1.msra.mxu0 0.0
      %429 = vmatprep.subr.mxu0 0.0
      %430 = vmatpush1.msra.mxu0 0.0
      %431 = vmatprep.subr.mxu0 0.0
      %432 = vmatpush1.msra.mxu0 0.0
      %433 = vmatprep.subr.mxu0 0.0
      %434 = vmatpush1.msra.mxu0 0.0
      %435 = vmatprep.subr.mxu0 0.0
      %436 = vmatpush1.msra.mxu0 0.0
      %437 = vmatprep.mubr.f32.mxu0 0.0
      %438 = vmatmul.mubr.f32.gmra.mrb[0].mxu0 %v369
      %v439 = vpop.f32.mrb[0].mxu0
      %v440 = vadd.f32 0.0, %v439
      %v441 = vpop.f32.mrb[0].mxu0
      %442 = vmatprep.mubr.f32.mxu0 0.0
      %443 = vmatmul.mubr.f32.gmra.mrb[0].mxu0 %v371
      %v444 = vpop.f32.mrb[0].mxu0
      %v445 = vadd.f32 0.0, %v444
      %v446 = vpop.f32.mrb[0].mxu0
      %447 = vdwg.mxu0
      %s448 = scalar_lea.vmem %s181, 32
      %449 = vst.msk [vmem:[%s448] sm:$0xff] %vm271, %v440
      %450 = vst.msk [vmem:[%s448 + $0x8] sm:$0xff] %vm271, %v445
      %v451 = vld [vmem:[%s274] sm:$0xff]
      %v452 = vld [vmem:[%s274 + $0x8] sm:$0xff]
      %v453 = vld [vmem:[%s274 + $0x10] sm:$0xff]
      %v454 = vld [vmem:[%s274 + $0x18] sm:$0xff]
      %455 = vmatprep.subr.mxu0 0.0
      %456 = vmatpush1.msra.mxu0 %v451
      %457 = vmatprep.subr.mxu0 0.0
      %458 = vmatpush1.msra.mxu0 %v452
      %459 = vmatprep.subr.mxu0 0.0
      %460 = vmatpush1.msra.mxu0 %v453
      %461 = vmatprep.subr.mxu0 0.0
      %462 = vmatpush1.msra.mxu0 %v454
      %463 = vmatprep.subr.mxu0 0.0
      %464 = vmatpush1.msra.mxu0 0.0
      %465 = vmatprep.subr.mxu0 0.0
      %466 = vmatpush1.msra.mxu0 0.0
      %467 = vmatprep.subr.mxu0 0.0
      %468 = vmatpush1.msra.mxu0 0.0
      %469 = vmatprep.subr.mxu0 0.0
      %470 = vmatpush1.msra.mxu0 0.0
      %471 = vmatprep.subr.mxu0 0.0
      %472 = vmatpush1.msra.mxu0 0.0
      %473 = vmatprep.subr.mxu0 0.0
      %474 = vmatpush1.msra.mxu0 0.0
      %475 = vmatprep.subr.mxu0 0.0
      %476 = vmatpush1.msra.mxu0 0.0
      %477 = vmatprep.subr.mxu0 0.0
      %478 = vmatpush1.msra.mxu0 0.0
      %479 = vmatprep.subr.mxu0 0.0
      %480 = vmatpush1.msra.mxu0 0.0
      %481 = vmatprep.subr.mxu0 0.0
      %482 = vmatpush1.msra.mxu0 0.0
      %483 = vmatprep.subr.mxu0 0.0
      %484 = vmatpush1.msra.mxu0 0.0
      %485 = vmatprep.subr.mxu0 0.0
      %486 = vmatpush1.msra.mxu0 0.0
      %487 = vmatprep.subr.mxu0 0.0
      %488 = vmatpush1.msra.mxu0 0.0
      %489 = vmatprep.subr.mxu0 0.0
      %490 = vmatpush1.msra.mxu0 0.0
      %491 = vmatprep.subr.mxu0 0.0
      %492 = vmatpush1.msra.mxu0 0.0
      %493 = vmatprep.subr.mxu0 0.0
      %494 = vmatpush1.msra.mxu0 0.0
      %495 = vmatprep.subr.mxu0 0.0
      %496 = vmatpush1.msra.mxu0 0.0
      %497 = vmatprep.subr.mxu0 0.0
      %498 = vmatpush1.msra.mxu0 0.0
      %499 = vmatprep.subr.mxu0 0.0
      %500 = vmatpush1.msra.mxu0 0.0
      %501 = vmatprep.subr.mxu0 0.0
      %502 = vmatpush1.msra.mxu0 0.0
      %503 = vmatprep.subr.mxu0 0.0
      %504 = vmatpush1.msra.mxu0 0.0
      %505 = vmatprep.subr.mxu0 0.0
      %506 = vmatpush1.msra.mxu0 0.0
      %507 = vmatprep.subr.mxu0 0.0
      %508 = vmatpush1.msra.mxu0 0.0
      %509 = vmatprep.subr.mxu0 0.0
      %510 = vmatpush1.msra.mxu0 0.0
      %511 = vmatprep.subr.mxu0 0.0
      %512 = vmatpush1.msra.mxu0 0.0
      %513 = vmatprep.subr.mxu0 0.0
      %514 = vmatpush1.msra.mxu0 0.0
      %515 = vmatprep.subr.mxu0 0.0
      %516 = vmatpush1.msra.mxu0 0.0
      %517 = vmatprep.subr.mxu0 0.0
      %518 = vmatpush1.msra.mxu0 0.0
      %519 = vmatprep.mubr.f32.mxu0 0.0
      %520 = vmatmul.mubr.f32.gmra.mrb[0].mxu0 %v369
      %v521 = vpop.f32.mrb[0].mxu0
      %v522 = vadd.f32 0.0, %v521
      %v523 = vpop.f32.mrb[0].mxu0
      %524 = vmatprep.mubr.f32.mxu0 0.0
      %525 = vmatmul.mubr.f32.gmra.mrb[0].mxu0 %v371
      %v526 = vpop.f32.mrb[0].mxu0
      %v527 = vadd.f32 0.0, %v526
      %v528 = vpop.f32.mrb[0].mxu0
      %529 = vdwg.mxu0
      %s530 = scalar_lea.vmem %s181, 48
      %531 = vst.msk [vmem:[%s530] sm:$0xff] %vm271, %v522
      %532 = vst.msk [vmem:[%s530 + $0x8] sm:$0xff] %vm271, %v527
      %s533 = smul.u32 2, %s18
      %p534 = scmp.lt.s32.totalorder %s17, 1
      %s535 = scalar_select %p534, %s17, 1
      %p536 = scmp.lt.s32.totalorder %s533, 1
      %s537 = scalar_select %p536, %s533, 1
      %s538 = smul.addr %s535, 8
      %s539 = sadd.s32 %s537, %s538
      %s540 = smul.addr %s539, 8
      %s541 = scalar_lea.vmem %s2, %s540
      // Predicated region
      $region29: #{reorg_forward.1} parent=27 // pred_check
        %p542 = pneg %p94
      $region30: #{reorg_forward.1} parent=27 // pred_check_branch
        %544 = sbr.rel (%p542) target = $region32
      $region31: #{reorg_forward.1} parent=27 // pred_region
        %s545 = smul.u32 2, %s18
      $region32: #{reorg_forward.1} parent=27 // pred_fallthru
        _
    $region28: #{reorg_forward.1} parent=5 // pred_fallthru
      _
    %p546 = scmp.le.s32.totalorder 2, %s8
    // Predicated region
    $region33: #{reorg_forward.1} parent=5 // pred_check
      %p547 = pneg %p546
    $region34: #{reorg_forward.1} parent=5 // pred_check_branch
      %549 = sbr.rel (%p547) target = $region36
    $region35: #{reorg_forward.1} parent=5 // pred_region
      %s550 = ssub.s32 %s8, 2
      // Predicated region
      $region37: #{reorg_forward.1} parent=35 // pred_check
        %p551 = pneg %p100
      $region38: #{reorg_forward.1} parent=35 // pred_check_branch
        %553 = sbr.rel (%p551) target = $region40
      $region39: #{reorg_forward.1} parent=35 // pred_region
        %s554 = smul.u32 2, %s20
        %p555 = scmp.lt.s32.totalorder %s19, 1
        %s556 = scalar_select %p555, %s19, 1
        %p557 = scmp.lt.s32.totalorder %s554, 1
        %s558 = scalar_select %p557, %s554, 1
        %s559 = smul.addr %s556, 8
        %s560 = sadd.s32 %s558, %s559
        %s561 = smul.addr %s560, 8
        %s562 = scalar_lea.vmem %s2, %s561
      $region40: #{reorg_forward.1} parent=35 // pred_fallthru
        _
    $region36: #{reorg_forward.1} parent=5 // pred_fallthru
      _
  $region6: #{reorg_forward.1} parent=0 // loop_footer
    %s12 = sadd.s32 1, %s8
  $region7: #{reorg_forward.1} parent=0 // loop_footer_branch
    %7 = sbr.rel target = $region3
  $region8: #{reorg_forward.1} parent=0 // loop_exit
    _

</llo_original>
